<compile_context>
chip_gen: v5e
topology: v5e:2x2
jax: 0.10.0
libtpu: 0.0.40
codegen_flags: <defaults>
</compile_context>

<pallas_src>
import jax
import jax.numpy as jnp
from jax.experimental import pallas as pl
from jax.experimental.pallas import tpu as pltpu


def _round_up(x, m):
    return ((x + m - 1) // m) * m


def continuous_head_kernel(x_ref, w1_ref, b1_ref, w2_ref, b2_ref, out_ref):
    # base: hidden = relu(x @ W1 + b1)   (f32 accumulation on the MXU)
    h = jnp.dot(x_ref[...], w1_ref[...],
                preferred_element_type=jnp.float32) + b1_ref[...]
    h = jnp.maximum(h, 0.0)
    # base output layer (cast activations to the weight dtype for the MXU,
    # keep the accumulator / elementwise path in f32)
    logits = jnp.dot(h.astype(w2_ref.dtype), w2_ref[...],
                     preferred_element_type=jnp.float32) + b2_ref[...]
    # ContinuousHead: sigmoid = 1 / (1 + exp(-x)); exp + approx-recip use the EUP.
    out_ref[...] = pl.reciprocal(1.0 + jnp.exp(-logits),
                                 approx=True).astype(out_ref.dtype)


def continuous_head(state, desired_return, desired_horizon, params,
                    *, tile_b=512, compute_dtype=jnp.bfloat16):
    """state: [B, S], desired_return: [B, R], desired_horizon: [B, H]."""
    w1s, w1r, w1h, b1, w2, b2 = params
    B = state.shape[0]

    # --- Fuse the three W1 partial matmuls at trace time (concat == split-sum).
    x = jnp.concatenate([state, desired_return, desired_horizon], axis=-1)
    w1 = jnp.concatenate([w1s, w1r, w1h], axis=0)
    d_in = x.shape[1]
    hid = w1.shape[1]
    n_out = w2.shape[1]

    # --- bf16 operands for MXU + HBM bandwidth; biases stay f32 (VPU adds in f32).
    x = x.astype(compute_dtype)
    w1 = w1.astype(compute_dtype)
    w2 = w2.astype(compute_dtype)
    b1 = jnp.reshape(b1, (1, hid)).astype(jnp.float32)
    b2 = jnp.reshape(b2, (1, n_out)).astype(jnp.float32)

    # --- Batch tiling: tile is a multiple of 8 sublanes; pad B up to a multiple.
    tb = min(tile_b, _round_up(B, 8))
    b_pad = _round_up(B, tb)
    if b_pad != B:
        x = jnp.pad(x, ((0, b_pad - B), (0, 0)))
    grid = (b_pad // tb,)

    itemsize = jnp.dtype(compute_dtype).itemsize
    cost = pl.CostEstimate(
        flops=int(2 * b_pad * (d_in * hid + hid * n_out)),
        transcendentals=int(b_pad * n_out),
        bytes_accessed=int(b_pad * d_in * itemsize
                           + (d_in * hid + hid * n_out) * itemsize
                           + (hid + n_out) * 4
                           + b_pad * n_out * 4),
    )

    out = pl.pallas_call(
        continuous_head_kernel,
        out_shape=jax.ShapeDtypeStruct((b_pad, n_out), jnp.float32),
        grid_spec=pltpu.PrefetchScalarGridSpec(
            num_scalar_prefetch=0,
            grid=grid,
            in_specs=[
                pl.BlockSpec((tb, d_in), lambda i: (i, 0)),     # streamed batch tile
                pl.BlockSpec((d_in, hid), lambda i: (0, 0)),    # W1: VMEM-resident
                pl.BlockSpec((1, hid), lambda i: (0, 0)),       # b1
                pl.BlockSpec((hid, n_out), lambda i: (0, 0)),   # W2
                pl.BlockSpec((1, n_out), lambda i: (0, 0)),     # b2
            ],
            out_specs=pl.BlockSpec((tb, n_out), lambda i: (i, 0)),
        ),
        compiler_params=pltpu.CompilerParams(
            dimension_semantics=("parallel",),          # shard batch over v7x's 2 TCs
            vmem_limit_bytes=32 * 1024 * 1024,
        ),
        cost_estimate=cost,
    )(x, w1, b1, w2, b2)
    return out[:B]


def _reference_f32(state, desired_return, desired_horizon, params):
    w1s, w1r, w1h, b1, w2, b2 = params
    x = jnp.concatenate([state, desired_return, desired_horizon], axis=-1)
    w1 = jnp.concatenate([w1s, w1r, w1h], axis=0)
    h = jnp.maximum(x @ w1 + b1, 0.0)
    return jax.nn.sigmoid(h @ w2 + b2)


def _reference_lowp(state, desired_return, desired_horizon, params, compute_dtype):
    # Emulates the kernel's bf16-operand / f32-accumulate math.
    w1s, w1r, w1h, b1, w2, b2 = params
    x = jnp.concatenate([state, desired_return, desired_horizon],
                        axis=-1).astype(compute_dtype)
    w1 = jnp.concatenate([w1s, w1r, w1h], axis=0).astype(compute_dtype)
    h = jnp.dot(x, w1, preferred_element_type=jnp.float32) + b1
    h = jnp.maximum(h, 0.0)
    logits = jnp.dot(h.astype(compute_dtype), w2.astype(compute_dtype),
                     preferred_element_type=jnp.float32) + b2
    return jax.nn.sigmoid(logits)


if __name__ == "__main__":
    B, S, R, H, HID, NA = 8, 16, 2, 1, 32, 4

    key = jax.random.PRNGKey(0)
    ks = jax.random.split(key, 9)

    state = jax.random.normal(ks[0], (B, S), jnp.float32)
    desired_return = jax.random.normal(ks[1], (B, R), jnp.float32)
    desired_horizon = jax.random.uniform(ks[2], (B, H), jnp.float32, 1.0, 50.0)

    # Deterministic synthetic parameters (base network weights).
    w1s = jax.random.normal(ks[3], (S, HID), jnp.float32) * 0.1
    w1r = jax.random.normal(ks[4], (R, HID), jnp.float32) * 0.1
    w1h = jax.random.normal(ks[5], (H, HID), jnp.float32) * 0.1
    b1 = jax.random.normal(ks[6], (1, HID), jnp.float32) * 0.1
    w2 = jax.random.normal(ks[7], (HID, NA), jnp.float32) * 0.1
    b2 = jax.random.normal(ks[8], (1, NA), jnp.float32) * 0.1
    params = (w1s, w1r, w1h, b1, w2, b2)

    out = continuous_head(state, desired_return, desired_horizon, params)
    out = jax.block_until_ready(out)
    assert out.shape == (B, NA)

    # Tight check against a reference doing the same bf16-operand math.
    ref_lp = _reference_lowp(state, desired_return, desired_horizon, params,
                             jnp.bfloat16)
    assert jnp.allclose(out, ref_lp, atol=1e-2, rtol=1e-2)

    # Loose check against the full-f32 reference (bf16 operands + approx recip).
    ref32 = _reference_f32(state, desired_return, desired_horizon, params)
    assert jnp.allclose(out, ref32, atol=5e-2, rtol=5e-2)

    print("KERNEL_OK")
</pallas_src>

<mosaic_0001>
module attributes {stable_mosaic.version = 11 : i64} {
  func.func @continuous_head_kernel(%arg0: i32, %arg1: memref<8x19xbf16, #tpu.memory_space<vmem>>, %arg2: memref<19x32xbf16, #tpu.memory_space<vmem>>, %arg3: memref<1x32xf32, #tpu.memory_space<vmem>>, %arg4: memref<32x4xbf16, #tpu.memory_space<vmem>>, %arg5: memref<1x4xf32, #tpu.memory_space<vmem>>, %arg6: memref<8x4xf32, #tpu.memory_space<vmem>>) attributes {dimension_semantics = [#tpu.dimension_semantics<parallel>], iteration_bounds = array<i64: 1>, scalar_prefetch = 0 : i64, scratch_operands = 0 : i64, tpu.core_type = #tpu.core_type<tc>, window_params = [{transform_indices = @transform_0, window_bounds = array<i64: 8, 19>}, {pipeline_mode = #tpu.pipeline_mode<synchronous>, transform_indices = @transform_1, window_bounds = array<i64: 19, 32>}, {pipeline_mode = #tpu.pipeline_mode<synchronous>, transform_indices = @transform_2, window_bounds = array<i64: 1, 32>}, {pipeline_mode = #tpu.pipeline_mode<synchronous>, transform_indices = @transform_3, window_bounds = array<i64: 32, 4>}, {pipeline_mode = #tpu.pipeline_mode<synchronous>, transform_indices = @transform_4, window_bounds = array<i64: 1, 4>}, {transform_indices = @transform_5, window_bounds = array<i64: 8, 4>}]} {
    %c0 = arith.constant 0 : index
    %c0_0 = arith.constant 0 : index
    %0 = vector.load %arg1[%c0, %c0_0] : memref<8x19xbf16, #tpu.memory_space<vmem>>, vector<8x19xbf16>
    %c0_1 = arith.constant 0 : index
    %c0_2 = arith.constant 0 : index
    %1 = vector.load %arg2[%c0_1, %c0_2] : memref<19x32xbf16, #tpu.memory_space<vmem>>, vector<19x32xbf16>
    %cst = arith.constant dense<0.000000e+00> : vector<8x32xf32>
    %2 = tpu.matmul %0, %1, %cst {dimension_numbers = #tpu.dot_dimension_numbers<[1], [0], [0], [1], [0, 0, 1, 1], [], []>} : vector<8x19xbf16>, vector<19x32xbf16>, vector<8x32xf32> -> vector<8x32xf32>
    %c0_3 = arith.constant 0 : index
    %c0_4 = arith.constant 0 : index
    %3 = vector.load %arg3[%c0_3, %c0_4] : memref<1x32xf32, #tpu.memory_space<vmem>>, vector<1x32xf32>
    %4 = vector.broadcast %3 : vector<1x32xf32> to vector<8x32xf32>
    %5 = arith.addf %2, %4 : vector<8x32xf32>
    %cst_5 = arith.constant 0.000000e+00 : f32
    %6 = vector.broadcast %cst_5 : f32 to vector<8x32xf32>
    %7 = arith.maximumf %5, %6 : vector<8x32xf32>
    %8 = arith.truncf %7 : vector<8x32xf32> to vector<8x32xbf16>
    %c0_6 = arith.constant 0 : index
    %c0_7 = arith.constant 0 : index
    %9 = vector.load %arg4[%c0_6, %c0_7] : memref<32x4xbf16, #tpu.memory_space<vmem>>, vector<32x4xbf16>
    %cst_8 = arith.constant dense<0.000000e+00> : vector<8x4xf32>
    %10 = tpu.matmul %8, %9, %cst_8 {dimension_numbers = #tpu.dot_dimension_numbers<[1], [0], [0], [1], [0, 0, 1, 1], [], []>} : vector<8x32xbf16>, vector<32x4xbf16>, vector<8x4xf32> -> vector<8x4xf32>
    %c0_9 = arith.constant 0 : index
    %c0_10 = arith.constant 0 : index
    %11 = vector.load %arg5[%c0_9, %c0_10] : memref<1x4xf32, #tpu.memory_space<vmem>>, vector<1x4xf32>
    %12 = vector.broadcast %11 : vector<1x4xf32> to vector<8x4xf32>
    %13 = arith.addf %10, %12 : vector<8x4xf32>
    %cst_11 = arith.constant 0.000000e+00 : f32
    %14 = vector.broadcast %cst_11 : f32 to vector<8x4xf32>
    %15 = arith.subf %14, %13 : vector<8x4xf32>
    %16 = math.exp %15 : vector<8x4xf32>
    %cst_12 = arith.constant 1.000000e+00 : f32
    %17 = vector.broadcast %cst_12 : f32 to vector<8x4xf32>
    %18 = arith.addf %17, %16 : vector<8x4xf32>
    %19 = tpu.reciprocal %18 {approx = true} : vector<8x4xf32> -> vector<8x4xf32>
    %c0_13 = arith.constant 0 : index
    %c0_14 = arith.constant 0 : index
    %20 = vector.load %arg6[%c0_13, %c0_14] : memref<8x4xf32, #tpu.memory_space<vmem>>, vector<8x4xf32>
    tpu.vector_store %arg6[%c0_13, %c0_14], %19 {strides = array<i32>} : memref<8x4xf32, #tpu.memory_space<vmem>>, vector<8x4xf32>,
    return
  }
  func.func @transform_0(%arg0: i32) -> (i32, i32) {
    %c0_i32 = arith.constant 0 : i32
    %c0_i32_0 = arith.constant 0 : i32
    return %arg0, %c0_i32 : i32, i32
  }
  func.func @transform_1(%arg0: i32) -> (i32, i32) {
    %c0_i32 = arith.constant 0 : i32
    %c0_i32_0 = arith.constant 0 : i32
    %c0_i32_1 = arith.constant 0 : i32
    return %c0_i32, %c0_i32_0 : i32, i32
  }
  func.func @transform_2(%arg0: i32) -> (i32, i32) {
    %c0_i32 = arith.constant 0 : i32
    %c0_i32_0 = arith.constant 0 : i32
    %c0_i32_1 = arith.constant 0 : i32
    return %c0_i32, %c0_i32_0 : i32, i32
  }
  func.func @transform_3(%arg0: i32) -> (i32, i32) {
    %c0_i32 = arith.constant 0 : i32
    %c0_i32_0 = arith.constant 0 : i32
    %c0_i32_1 = arith.constant 0 : i32
    return %c0_i32, %c0_i32_0 : i32, i32
  }
  func.func @transform_4(%arg0: i32) -> (i32, i32) {
    %c0_i32 = arith.constant 0 : i32
    %c0_i32_0 = arith.constant 0 : i32
    %c0_i32_1 = arith.constant 0 : i32
    return %c0_i32, %c0_i32_0 : i32, i32
  }
  func.func @transform_5(%arg0: i32) -> (i32, i32) {
    %c0_i32 = arith.constant 0 : i32
    %c0_i32_0 = arith.constant 0 : i32
    return %arg0, %c0_i32 : i32, i32
  }
}

</mosaic_0001>

<llo_original>
// kernel: tpu_custom_call.1
$region0: #{tpu_custom_call.1}
  #allocation0 [shape = 'u32[]', space=smem, size = 0x4, offset = 0x4, fixed_abs, tag = 'smem constant byte address 0x4 - core index']
  #allocation1 [shape = 'u32[72,128]{1,0:T(1,128)}', space=vmem, size = 0x9000, scoped, tag = 'internal scratch']
  %s0 = inlined_call_operand.vmem [shape: bf16[8,19], index: 0, kind: input, shape index: {}]
  %s1 = inlined_call_operand.vmem [shape: bf16[19,32], index: 1, kind: input, shape index: {}]
  %s2 = inlined_call_operand.vmem [shape: f32[1,32], index: 2, kind: input, shape index: {}]
  %s3 = inlined_call_operand.vmem [shape: bf16[32,4], index: 3, kind: input, shape index: {}]
  %s4 = inlined_call_operand.vmem [shape: f32[1,4], index: 4, kind: input, shape index: {}]
  %s5 = inlined_call_operand.vmem [shape: f32[8,4], index: 5, kind: output, shape index: {}]
  %s6 = sld [smem:[#allocation0]]
  $region30: #{tpu_custom_call.1} parent=0
    _
  %s8 = ssub.s32 1, %s6
  %s9 = scalar_select 0, %s8, %s6
  // Predicated region
  $region2: #{tpu_custom_call.1} parent=0 // pred_check
    _
  $region3: #{tpu_custom_call.1} parent=0 // pred_check_branch
    %11 = sbr.rel (0) target = $region5
  $region4: #{tpu_custom_call.1} parent=0 // pred_region
    _
  $region5: #{tpu_custom_call.1} parent=0 // pred_fallthru
    _
  // Predicated region
  $region6: #{tpu_custom_call.1} parent=0 // pred_check
    _
  $region7: #{tpu_custom_call.1} parent=0 // pred_check_branch
    %13 = sbr.rel (0) target = $region9
  $region8: #{tpu_custom_call.1} parent=0 // pred_region
    _
  $region9: #{tpu_custom_call.1} parent=0 // pred_fallthru
    _
  // Predicated region
  $region10: #{tpu_custom_call.1} parent=0 // pred_check
    _
  $region11: #{tpu_custom_call.1} parent=0 // pred_check_branch
    %15 = sbr.rel (0) target = $region13
  $region12: #{tpu_custom_call.1} parent=0 // pred_region
    _
  $region13: #{tpu_custom_call.1} parent=0 // pred_fallthru
    _
  // Predicated region
  $region14: #{tpu_custom_call.1} parent=0 // pred_check
    _
  $region15: #{tpu_custom_call.1} parent=0 // pred_check_branch
    %17 = sbr.rel (0) target = $region17
  $region16: #{tpu_custom_call.1} parent=0 // pred_region
    _
  $region17: #{tpu_custom_call.1} parent=0 // pred_fallthru
    _
  // Predicated region
  $region18: #{tpu_custom_call.1} parent=0 // pred_check
    _
  $region19: #{tpu_custom_call.1} parent=0 // pred_check_branch
    %19 = sbr.rel (0) target = $region21
  $region20: #{tpu_custom_call.1} parent=0 // pred_region
    _
  $region21: #{tpu_custom_call.1} parent=0 // pred_fallthru
    _
  %v21 = vld [vmem:[%s0] sm:$0xf]
  %v22 = vld [vmem:[%s1] sm:$0xf]
  %v23 = vld [vmem:[%s1 + $0x4] sm:$0xf]
  %v24 = vld [vmem:[%s1 + $0x8] sm:$0x3]
  %v25 = vld [vmem:[%s2] sm:$0x1]
  %v27 = vperm.slane %v25, 0
  %v32 = vunpack.c.l.b16 %v22
  %v33 = vunpack.c.l.b16 %v23
  %v34 = vunpack.c.l.b16 %v24
  %v35 = vpack.c.b16 %v33, %v32
  %v36 = vpack.c.b16 %v34, %v34
  %vm38 = vcmask 154624
  %v40 = vsel %vm38, %v21, 0
  %vm42 = vcmask 1040384
  %vm43 = vcmask 1041408
  %v44 = vsel %vm42, 4294967295, 65535
  %v45 = vsel %vm43, %v44, 0
  %v47 = vand.u32 %v36, %v45
  %49 = vmatpush.bf16.msra.mxu0 0
  %50 = vmatpush.bf16.msra.mxu0 0
  %51 = vmatpush.bf16.msra.mxu0 0
  %52 = vmatpush.bf16.msra.mxu0 0
  %53 = vmatpush.bf16.msra.mxu0 0
  %54 = vmatpush.bf16.msra.mxu0 0
  %55 = vmatpush.bf16.msra.mxu0 %v47
  %56 = vmatpush.bf16.msra.mxu0 %v35
  %57 = vmatmul.bf16.gmra.mxu0 %v40
  %v58 = vpop.f32.mrf.mxu0
  %v59 = vadd.f32 %v27, %v58
  %v60 = vpop.f32.mrf.mxu0
  %61 = vdwg.mxu0
  %v62 = vmax.f32 %v59, 0.0
  %v63 = vpack.c.bf16 %v62, %v62
  %v64 = vld [vmem:[%s3] sm:$0xf]
  %v65 = vld [vmem:[%s3 + $0x4] sm:$0xf]
  %v66 = vld [vmem:[%s3 + $0x8] sm:$0xf]
  %v67 = vld [vmem:[%s3 + $0xc] sm:$0xf]
  %v68 = vld [vmem:[%s4] sm:$0x1]
  %v70 = vperm.slane %v68, 0
  %v76 = vunpack.c.l.b16 %v64
  %v77 = vunpack.c.l.b16 %v65
  %v78 = vunpack.c.l.b16 %v66
  %v79 = vunpack.c.l.b16 %v67
  %v80 = vpack.c.b16 %v77, %v76
  %v81 = vpack.c.b16 %v79, %v78
  %vm84 = vcmask 261120
  %v86 = vsel %vm84, %v63, 0
  %88 = vmatpush.bf16.msra.mxu0 0
  %89 = vmatpush.bf16.msra.mxu0 0
  %90 = vmatpush.bf16.msra.mxu0 0
  %91 = vmatpush.bf16.msra.mxu0 0
  %92 = vmatpush.bf16.msra.mxu0 0
  %93 = vmatpush.bf16.msra.mxu0 0
  %94 = vmatpush.bf16.msra.mxu0 %v81
  %95 = vmatpush.bf16.msra.mxu0 %v80
  %96 = vmatmul.bf16.gmra.mxu0 %v86
  %v97 = vpop.f32.mrf.mxu0
  %v98 = vadd.f32 %v70, %v97
  %v99 = vpop.f32.mrf.mxu0
  %100 = vdwg.mxu0
  %v101 = vsub.f32 0.0, %v98
  %v102 = vmul.f32 %v101, 1.442695
  %v103 = vpow.pop %v102
  %v104 = vadd.f32 %v103, 1.0
  %v105 = vrcp.pop %v104
  %vm106 = vcmask 31744
  %107 = vst.msk [vmem:[%s5] sm:$0xff] %vm106, %v105
  // Predicated region
  $region22: #{tpu_custom_call.1} parent=0 // pred_check
    _
  $region23: #{tpu_custom_call.1} parent=0 // pred_check_branch
    %109 = sbr.rel (0) target = $region25
  $region24: #{tpu_custom_call.1} parent=0 // pred_region
    _
  $region25: #{tpu_custom_call.1} parent=0 // pred_fallthru
    _
  // Predicated region
  $region26: #{tpu_custom_call.1} parent=0 // pred_check
    _
  $region27: #{tpu_custom_call.1} parent=0 // pred_check_branch
    %111 = sbr.rel (0) target = $region29
  $region28: #{tpu_custom_call.1} parent=0 // pred_region
    _
  $region29: #{tpu_custom_call.1} parent=0 // pred_fallthru
    _

</llo_original>
